<compile_context>
chip_gen: v6e
topology: v6e:2x2x1
jax: 0.10.0
libtpu: 0.0.40
codegen_flags: <defaults>
</compile_context>

<pallas_src>
import functools

import jax
import jax.numpy as jnp
from jax.experimental import pallas as pl
from jax.experimental.pallas import tpu as pltpu


def chebconv_kernel(x_ref, lap_ref, w_ref, b_ref, o_ref, cheb_ref, *, K):
    """One batch tile per grid step.

    x_ref:    (TB, N, F_in)       bf16 node features
    lap_ref:  (TB, N, N)          bf16 (scaled) graph laplacian
    w_ref:    (K*F_in, F_out_p)   bf16 linear weight (transposed, lane-padded)
    b_ref:    (1, F_out_p)        f32  bias (lane-padded)
    o_ref:    (TB, N, F_out_p)    bf16 output
    cheb_ref: (TB*N, K*F_in)      bf16 VMEM scratch holding all T_k
    """
    TB, N, F_in = x_ref.shape
    F_out_p = o_ref.shape[-1]

    lap = lap_ref[...]                                   # bf16 (TB, N, N)

    def lap_mm(t_bf16):
        # L @ T_k : bf16 MXU operands, f32 accumulation (batched over TB).
        return jnp.einsum("bnm,bmf->bnf", lap, t_bf16,
                          preferred_element_type=jnp.float32)

    t0_bf = x_ref[...]                                   # bf16 (TB, N, F_in)
    cheb_ref[:, 0:F_in] = t0_bf.reshape(TB * N, F_in)

    if K > 1:
        t_prev = t0_bf.astype(jnp.float32)               # f32 recurrence state
        t_cur = lap_mm(t0_bf)                            # f32  T1 = L @ T0
        t_cur_bf = t_cur.astype(jnp.bfloat16)            # cast once, reuse
        cheb_ref[:, F_in:2 * F_in] = t_cur_bf.reshape(TB * N, F_in)
        for k in range(2, K):
            # T_k = 2 * L @ T_{k-1} - T_{k-2}   (subtraction kept in f32)
            t_next = 2.0 * lap_mm(t_cur_bf) - t_prev
            t_next_bf = t_next.astype(jnp.bfloat16)
            cheb_ref[:, k * F_in:(k + 1) * F_in] = t_next_bf.reshape(TB * N, F_in)
            t_prev, t_cur_bf = t_cur, t_next_bf
            t_cur = t_next

    # Single merged projection: (TB*N, K*F_in) @ (K*F_in, F_out_p), f32 acc.
    out2d = jnp.dot(cheb_ref[...], w_ref[...],
                    preferred_element_type=jnp.float32)
    out2d = out2d + b_ref[...]
    o_ref[...] = out2d.reshape(TB, N, F_out_p).astype(o_ref.dtype)


def _vmem_capacity_bytes():
    # Generation-aware VMEM capacity (128 MiB on v5e/v6e, 64 MiB on v7x).
    try:
        cap = int(pltpu.get_tpu_info().vmem_capacity_bytes)
        if cap >= (16 << 20):
            return cap
    except Exception:
        pass
    return 64 << 20  # conservative fallback (v7x physical VMEM)


def chebnet_conv(x, laplacian, weight, bias, *, K, batch_tile=None,
                 out_dtype=jnp.bfloat16):
    """x: (B, N, F_in), laplacian: (B, N, N) dense,
    weight: (F_out, K*F_in) (PyTorch nn.Linear layout), bias: (F_out,)."""
    B, N, F_in = x.shape
    F_out = weight.shape[0]
    assert weight.shape[1] == K * F_in

    # Lane-dense output: pad F_out up to a multiple of 128 (unmasked stores);
    # the output itself is bf16 so padded writeback bytes stay modest.
    LANE = 128
    F_out_p = ((F_out + LANE - 1) // LANE) * LANE

    w_t = jnp.pad(weight.T.astype(jnp.bfloat16),
                  ((0, 0), (0, F_out_p - F_out)))               # (K*F_in, F_out_p)
    b_p = jnp.pad(bias.astype(jnp.float32),
                  (0, F_out_p - F_out)).reshape(1, F_out_p)     # (1, F_out_p)

    out_itemsize = jnp.dtype(out_dtype).itemsize
    vmem_cap = _vmem_capacity_bytes()
    vmem_budget = int(0.70 * vmem_cap)       # ~88 MiB v5e/v6e, ~44 MiB v7x

    def tile_vmem_bytes(tb):
        lap_t = tb * N * N * 2               # bf16 input block
        x_t = tb * N * F_in * 2              # bf16 input block
        out_t = tb * N * F_out_p * out_itemsize
        w_b = K * F_in * F_out_p * 2
        b_b = F_out_p * 4
        pipelined = 2 * (lap_t + x_t + out_t + w_b + b_b)   # double-buffered
        scratch = tb * N * K * F_in * 2                      # cheb bf16 (single)
        # In-kernel temporaries: loaded laplacian value, f32 accumulator,
        # a few f32 T_k-sized values.
        temps = lap_t + tb * N * (F_out_p * 4 + 4 * F_in * 4)
        return pipelined + scratch + temps

    if tile_vmem_bytes(1) > vmem_budget:
        # TODO(synk): row-tile the (N, N) laplacian for very large N instead
        # of refusing here (see module-level TODO).
        raise NotImplementedError(
            f"N={N} too large for the per-batch full-laplacian kernel: "
            f"{tile_vmem_bytes(1)} B needed > VMEM budget {vmem_budget} B")

    if batch_tile is None:
        # Largest batch tile within the VMEM budget; keep >= 2 grid steps
        # when B >= 2 so the 'parallel' batch axis spans both v7x TensorCores.
        max_tb = 1 if B < 2 else int(pl.cdiv(B, 2))
        batch_tile = 1
        for tb in range(max_tb, 0, -1):
            if tile_vmem_bytes(tb) <= vmem_budget:
                batch_tile = tb
                break
    batch_tile = max(1, min(int(batch_tile), B))

    # Pad B so the grid covers it exactly (padded batches are all-zero ->
    # they just compute the bias; sliced off below).
    num_tiles = int(pl.cdiv(B, batch_tile))
    B_pad = num_tiles * batch_tile

    x_in = x.astype(jnp.bfloat16)
    lap_in = laplacian.astype(jnp.bfloat16)
    if B_pad != B:
        x_in = jnp.pad(x_in, ((0, B_pad - B), (0, 0), (0, 0)))
        lap_in = jnp.pad(lap_in, ((0, B_pad - B), (0, 0), (0, 0)))

    working = tile_vmem_bytes(batch_tile)
    # Scoped-VMEM limit: working set + slack, clamped generation-aware
    # (<= ~48 MiB on v7x, <= ~96 MiB on v5e/v6e physical VMEM).
    vmem_limit = int(min(max(working + (8 << 20), 32 << 20),
                         int(0.75 * vmem_cap)))

    kernel = functools.partial(chebconv_kernel, K=K)

    out_padded = pl.pallas_call(
        kernel,
        out_shape=jax.ShapeDtypeStruct((B_pad, N, F_out_p), out_dtype),
        grid=(num_tiles,),
        in_specs=[
            pl.BlockSpec((batch_tile, N, F_in), lambda b: (b, 0, 0)),  # x
            pl.BlockSpec((batch_tile, N, N), lambda b: (b, 0, 0)),     # laplacian
            pl.BlockSpec((K * F_in, F_out_p), lambda b: (0, 0)),       # weight
            pl.BlockSpec((1, F_out_p), lambda b: (0, 0)),              # bias
        ],
        out_specs=pl.BlockSpec((batch_tile, N, F_out_p), lambda b: (b, 0, 0)),
        scratch_shapes=[pltpu.VMEM((batch_tile * N, K * F_in), jnp.bfloat16)],
        compiler_params=pltpu.CompilerParams(
            dimension_semantics=("parallel",),
            vmem_limit_bytes=vmem_limit,
        ),
    )(x_in, lap_in, w_t, b_p)

    return out_padded[:B, :, :F_out]


def chebnet_conv_ref(x, laplacian, weight, bias, *, K):
    """Pure-JAX f32 reference mirroring the PyTorch forward exactly."""
    x0 = x
    cheb = [x0]
    if K > 1:
        x1 = jnp.einsum("bnm,bmf->bnf", laplacian, x0)
        cheb.append(x1)
        for _ in range(2, K):
            x2 = 2.0 * jnp.einsum("bnm,bmf->bnf", laplacian, x1) - x0
            cheb.append(x2)
            x0, x1 = x1, x2
    cheb_x = jnp.concatenate(cheb, axis=-1)       # (B, N, K*F_in)
    return jnp.einsum("bnk,ok->bno", cheb_x, weight) + bias


if __name__ == "__main__":
    # Small, deterministic problem sizes.
    B, N, F_in, F_out, K = 2, 16, 8, 32, 3

    key = jax.random.PRNGKey(0)
    kx, kl, kw, kb = jax.random.split(key, 4)

    x = jax.random.normal(kx, (B, N, F_in), dtype=jnp.float32)

    # Synthetic symmetric "laplacian" per batch (dense stand-in for the
    # torch.sparse_coo_tensor argument).
    a = jax.random.normal(kl, (B, N, N), dtype=jnp.float32) * 0.1
    laplacian = 0.5 * (a + jnp.transpose(a, (0, 2, 1)))

    # nn.Linear(in_features*K, out_features) init: U(-1/sqrt(fan_in), +bound)
    fan_in = F_in * K
    bound = 1.0 / jnp.sqrt(jnp.float32(fan_in))
    weight = jax.random.uniform(kw, (F_out, fan_in), jnp.float32, -bound, bound)
    bias = jax.random.uniform(kb, (F_out,), jnp.float32, -bound, bound)

    out = chebnet_conv(x, laplacian, weight, bias, K=K)
    out = jax.block_until_ready(out)

    ref = chebnet_conv_ref(x, laplacian, weight, bias, K=K)
    assert out.shape == (B, N, F_out), out.shape
    # bf16 MXU operands + bf16 output vs pure-f32 reference -> mixed-precision
    # tolerance.
    out_f32 = out.astype(jnp.float32)
    assert jnp.allclose(out_f32, ref, atol=3e-2, rtol=3e-2), (
        float(jnp.max(jnp.abs(out_f32 - ref)))
    )

    print("KERNEL_OK")
</pallas_src>

<mosaic_0001>
module attributes {stable_mosaic.version = 11 : i64} {
  func.func @chebconv_kernel(%arg0: i32, %arg1: memref<1x16x8xbf16, #tpu.memory_space<vmem>>, %arg2: memref<1x16x16xbf16, #tpu.memory_space<vmem>>, %arg3: memref<24x128xbf16, #tpu.memory_space<vmem>>, %arg4: memref<1x128xf32, #tpu.memory_space<vmem>>, %arg5: memref<1x16x128xbf16, #tpu.memory_space<vmem>>, %arg6: memref<16x24xbf16, #tpu.memory_space<vmem>>) attributes {dimension_semantics = [#tpu.dimension_semantics<parallel>], iteration_bounds = array<i64: 2>, scalar_prefetch = 0 : i64, scratch_operands = 1 : i64, tpu.core_type = #tpu.core_type<tc>, window_params = [{transform_indices = @transform_0, window_bounds = array<i64: 1, 16, 8>}, {transform_indices = @transform_1, window_bounds = array<i64: 1, 16, 16>}, {pipeline_mode = #tpu.pipeline_mode<synchronous>, transform_indices = @transform_2, window_bounds = array<i64: 24, 128>}, {pipeline_mode = #tpu.pipeline_mode<synchronous>, transform_indices = @transform_3, window_bounds = array<i64: 1, 128>}, {transform_indices = @transform_4, window_bounds = array<i64: 1, 16, 128>}]} {
    %c0 = arith.constant 0 : index
    %c0_0 = arith.constant 0 : index
    %c0_1 = arith.constant 0 : index
    %0 = vector.load %arg2[%c0, %c0_0, %c0_1] : memref<1x16x16xbf16, #tpu.memory_space<vmem>>, vector<1x16x16xbf16>
    %c0_2 = arith.constant 0 : index
    %c0_3 = arith.constant 0 : index
    %c0_4 = arith.constant 0 : index
    %1 = vector.load %arg1[%c0_2, %c0_3, %c0_4] : memref<1x16x8xbf16, #tpu.memory_space<vmem>>, vector<1x16x8xbf16>
    %2 = vector.shape_cast %1 : vector<1x16x8xbf16> to vector<16x8xbf16>
    %c0_5 = arith.constant 0 : index
    %c0_6 = arith.constant 0 : index
    %3 = vector.load %arg6[%c0_5, %c0_6] : memref<16x24xbf16, #tpu.memory_space<vmem>>, vector<16x8xbf16>
    tpu.vector_store %arg6[%c0_5, %c0_6], %2 {strides = array<i32>} : memref<16x24xbf16, #tpu.memory_space<vmem>>, vector<16x8xbf16>,
    %4 = arith.extf %1 : vector<1x16x8xbf16> to vector<1x16x8xf32>
    "tpu.trace_start"() <{level = 10 : i32, message = "bnm,bmf->bnf"}> : () -> ()
    %cst = arith.constant dense<0.000000e+00> : vector<1x16x8xf32>
    %5 = tpu.matmul %0, %1, %cst {dimension_numbers = #tpu.dot_dimension_numbers<[2], [1], [1], [2], [0, 0, 0, 1, 1, 2], [0], [0]>} : vector<1x16x16xbf16>, vector<1x16x8xbf16>, vector<1x16x8xf32> -> vector<1x16x8xf32>
    "tpu.trace_stop"() : () -> ()
    %6 = arith.truncf %5 : vector<1x16x8xf32> to vector<1x16x8xbf16>
    %7 = vector.shape_cast %6 : vector<1x16x8xbf16> to vector<16x8xbf16>
    %c0_7 = arith.constant 0 : index
    %c8 = arith.constant 8 : index
    %8 = vector.load %arg6[%c0_7, %c8] : memref<16x24xbf16, #tpu.memory_space<vmem>>, vector<16x8xbf16>
    tpu.vector_store %arg6[%c0_7, %c8], %7 {strides = array<i32>} : memref<16x24xbf16, #tpu.memory_space<vmem>>, vector<16x8xbf16>,
    "tpu.trace_start"() <{level = 10 : i32, message = "bnm,bmf->bnf"}> : () -> ()
    %cst_8 = arith.constant dense<0.000000e+00> : vector<1x16x8xf32>
    %9 = tpu.matmul %0, %6, %cst_8 {dimension_numbers = #tpu.dot_dimension_numbers<[2], [1], [1], [2], [0, 0, 0, 1, 1, 2], [0], [0]>} : vector<1x16x16xbf16>, vector<1x16x8xbf16>, vector<1x16x8xf32> -> vector<1x16x8xf32>
    "tpu.trace_stop"() : () -> ()
    %cst_9 = arith.constant 2.000000e+00 : f32
    %10 = vector.broadcast %cst_9 : f32 to vector<1x16x8xf32>
    %11 = arith.mulf %10, %9 : vector<1x16x8xf32>
    %12 = arith.subf %11, %4 : vector<1x16x8xf32>
    %13 = arith.truncf %12 : vector<1x16x8xf32> to vector<1x16x8xbf16>
    %14 = vector.shape_cast %13 : vector<1x16x8xbf16> to vector<16x8xbf16>
    %c0_10 = arith.constant 0 : index
    %c16 = arith.constant 16 : index
    %15 = vector.load %arg6[%c0_10, %c16] : memref<16x24xbf16, #tpu.memory_space<vmem>>, vector<16x8xbf16>
    tpu.vector_store %arg6[%c0_10, %c16], %14 {strides = array<i32>} : memref<16x24xbf16, #tpu.memory_space<vmem>>, vector<16x8xbf16>,
    %c0_11 = arith.constant 0 : index
    %c0_12 = arith.constant 0 : index
    %16 = vector.load %arg6[%c0_11, %c0_12] : memref<16x24xbf16, #tpu.memory_space<vmem>>, vector<16x24xbf16>
    %c0_13 = arith.constant 0 : index
    %c0_14 = arith.constant 0 : index
    %17 = vector.load %arg3[%c0_13, %c0_14] : memref<24x128xbf16, #tpu.memory_space<vmem>>, vector<24x128xbf16>
    %cst_15 = arith.constant dense<0.000000e+00> : vector<16x128xf32>
    %18 = tpu.matmul %16, %17, %cst_15 {dimension_numbers = #tpu.dot_dimension_numbers<[1], [0], [0], [1], [0, 0, 1, 1], [], []>} : vector<16x24xbf16>, vector<24x128xbf16>, vector<16x128xf32> -> vector<16x128xf32>
    %c0_16 = arith.constant 0 : index
    %c0_17 = arith.constant 0 : index
    %19 = vector.load %arg4[%c0_16, %c0_17] : memref<1x128xf32, #tpu.memory_space<vmem>>, vector<1x128xf32>
    %20 = vector.broadcast %19 : vector<1x128xf32> to vector<16x128xf32>
    %21 = arith.addf %18, %20 : vector<16x128xf32>
    %22 = vector.shape_cast %21 : vector<16x128xf32> to vector<1x16x128xf32>
    %23 = arith.truncf %22 : vector<1x16x128xf32> to vector<1x16x128xbf16>
    %c0_18 = arith.constant 0 : index
    %c0_19 = arith.constant 0 : index
    %c0_20 = arith.constant 0 : index
    %24 = vector.load %arg5[%c0_18, %c0_19, %c0_20] : memref<1x16x128xbf16, #tpu.memory_space<vmem>>, vector<1x16x128xbf16>
    tpu.vector_store %arg5[%c0_18, %c0_19, %c0_20], %23 {strides = array<i32>} : memref<1x16x128xbf16, #tpu.memory_space<vmem>>, vector<1x16x128xbf16>,
    return
  }
  func.func @transform_0(%arg0: i32) -> (i32, i32, i32) {
    %c0_i32 = arith.constant 0 : i32
    %c0_i32_0 = arith.constant 0 : i32
    %c0_i32_1 = arith.constant 0 : i32
    return %arg0, %c0_i32, %c0_i32_0 : i32, i32, i32
  }
  func.func @transform_1(%arg0: i32) -> (i32, i32, i32) {
    %c0_i32 = arith.constant 0 : i32
    %c0_i32_0 = arith.constant 0 : i32
    %c0_i32_1 = arith.constant 0 : i32
    return %arg0, %c0_i32, %c0_i32_0 : i32, i32, i32
  }
  func.func @transform_2(%arg0: i32) -> (i32, i32) {
    %c0_i32 = arith.constant 0 : i32
    %c0_i32_0 = arith.constant 0 : i32
    %c0_i32_1 = arith.constant 0 : i32
    return %c0_i32, %c0_i32_0 : i32, i32
  }
  func.func @transform_3(%arg0: i32) -> (i32, i32) {
    %c0_i32 = arith.constant 0 : i32
    %c0_i32_0 = arith.constant 0 : i32
    %c0_i32_1 = arith.constant 0 : i32
    return %c0_i32, %c0_i32_0 : i32, i32
  }
  func.func @transform_4(%arg0: i32) -> (i32, i32, i32) {
    %c0_i32 = arith.constant 0 : i32
    %c0_i32_0 = arith.constant 0 : i32
    %c0_i32_1 = arith.constant 0 : i32
    return %arg0, %c0_i32, %c0_i32_0 : i32, i32, i32
  }
}

</mosaic_0001>

<llo_original>
// kernel: tpu_custom_call.1
$region0: #{tpu_custom_call.1}
  #allocation0 [shape = 'u32[]', space=smem, size = 0x4, offset = 0x4, fixed_abs, tag = 'smem constant byte address 0x4 - core index']
  #allocation1 [shape = 'u32[144,128]{1,0:T(1,128)}', space=vmem, size = 0x12000, scoped, tag = 'internal scratch']
  #allocation2 [shape = 'bf16[16,24]{1,0:T(8,128)(2,1)}', space=vmem, size = 0x1000, scoped, tag = 'scratch operand']
  %s0 = inlined_call_operand.vmem [shape: bf16[2,16,8], index: 0, kind: input, shape index: {}]
  %s1 = inlined_call_operand.vmem [shape: bf16[2,16,16], index: 1, kind: input, shape index: {}]
  %s2 = inlined_call_operand.hbm [shape: bf16[24,128], index: 2, kind: input, shape index: {}]
  %s3 = inlined_call_operand.vmem [shape: f32[1,128], index: 3, kind: input, shape index: {}]
  %s4 = inlined_call_operand.hbm [shape: bf16[2,16,128], index: 4, kind: output, shape index: {}]
  %s5 = sld [smem:[#allocation0]]
  $region53: #{tpu_custom_call.1} parent=0
    _
  %s7 = ssub.s32 1, %s5
  %s8 = scalar_select 0, %s7, %s5
  $region1: #{tpu_custom_call.1} parent=0
    #allocation3 [shape = 'u8[6144]{0}', space=vmem, size = 0x1800, scoped, tag = 'input window, operand 2, single buffered']
    #allocation4 [shape = 's32[2]{0}', space=sflag, size = 0x8, scoped, tag = 'scoped memory for tpu_custom_call.1']
    #allocation5 [shape = 's32[2]{0}', space=sflag, size = 0x8, scoped, tag = 'scoped memory for tpu_custom_call.1']
    #allocation6 [shape = 'u8[8192]{0}', space=vmem, size = 0x2000, scoped, tag = 'output window, operand 0']
    %9 = vsyncpa [#allocation4], 0
    %10 = vsyncpa [#allocation5], 0
    %s11 = scalar_lea.sflag [#allocation5], 1
    %12 = vsyncpa %s11, 0
    loop: start=0, step=1, limit=4
    $region2: #{tpu_custom_call.1} parent=1 // loop_pre_header
      _
    $region3: #{tpu_custom_call.1} parent=1 // loop_header
      %s14 = sphi 0, %s18
      %p15 = scmp.ge.s32.totalorder %s14, 4
      %s24 = sphi 0, %s26
      %s27 = sphi 0, %s24
      %s28 = sphi 0, %s27
      %s44 = sphi 0, %s28
      %s50 = sphi 0, %s52
      %s53 = sphi 0, %s50
      %s54 = sphi 0, %s53
      %s70 = sphi 0, %s54
      %s74 = sphi 0, %s74
      %s76 = sphi 0, %s74
      %s77 = sphi 0, %s76
      %s91 = sphi 0, %s77
      %s95 = sphi 0, %s95
      %s97 = sphi 0, %s95
      %s98 = sphi 0, %s97
      %s112 = sphi 0, %s98
      %s118 = sphi 0, %s120
      %s121 = sphi 0, %s118
      %s122 = sphi 0, %s121
      %s138 = sphi 0, %s122
    $region4: #{tpu_custom_call.1} parent=1 // loop_header_branch
      %17 = sbr.rel (%p15) target = $region8
    $region5: #{tpu_custom_call.1} parent=1 // loop_body
      %s19 = ssub.s32 %s14, 1
      %s20 = ssub.s32 %s14, 2
      %s21 = sadd.s32 %s14, 1
      %s22 = ssub.s32 %s14, %s21
      %p23 = scmp.eq.s32.totalorder %s22, 0
      %s25 = sadd.s32 %s24, 1
      %s26 = scalar_select %p23, %s24, %s25
      %p29 = pneg %p23
      %p30 = scmp.eq.s32.totalorder %s14, 1
      %p31 = por %p29, %p30
      %p32 = scmp.ne.s32.totalorder %s24, %s27
      %p33 = scmp.eq.s32.totalorder %s14, 0
      %p34 = por %p32, %p33
      %p35 = scmp.ne.s32.totalorder %s24, %s27
      %p36 = scmp.eq.s32.totalorder %s19, 1
      %p37 = por %p35, %p36
      %p38 = scmp.ne.s32.totalorder %s27, %s28
      %p39 = scmp.eq.s32.totalorder %s19, 0
      %p40 = por %p38, %p39
      %p41 = scmp.ne.s32.totalorder %s27, %s28
      %p42 = scmp.eq.s32.totalorder %s20, 1
      %p43 = por %p41, %p42
      %p45 = scmp.ne.s32.totalorder %s28, %s44
      %p46 = scmp.eq.s32.totalorder %s20, 0
      %p47 = por %p45, %p46
      %s48 = ssub.s32 %s14, %s21
      %p49 = scmp.eq.s32.totalorder %s48, 0
      %s51 = sadd.s32 %s50, 1
      %s52 = scalar_select %p49, %s50, %s51
      %p55 = pneg %p49
      %p56 = scmp.eq.s32.totalorder %s14, 1
      %p57 = por %p55, %p56
      %p58 = scmp.ne.s32.totalorder %s50, %s53
      %p59 = scmp.eq.s32.totalorder %s14, 0
      %p60 = por %p58, %p59
      %p61 = scmp.ne.s32.totalorder %s50, %s53
      %p62 = scmp.eq.s32.totalorder %s19, 1
      %p63 = por %p61, %p62
      %p64 = scmp.ne.s32.totalorder %s53, %s54
      %p65 = scmp.eq.s32.totalorder %s19, 0
      %p66 = por %p64, %p65
      %p67 = scmp.ne.s32.totalorder %s53, %s54
      %p68 = scmp.eq.s32.totalorder %s20, 1
      %p69 = por %p67, %p68
      %p71 = scmp.ne.s32.totalorder %s54, %s70
      %p72 = scmp.eq.s32.totalorder %s20, 0
      %p73 = por %p71, %p72
      %s75 = sadd.s32 %s74, 1
      %p78 = scmp.eq.s32.totalorder %s14, 1
      %p79 = scmp.ne.s32.totalorder %s74, %s76
      %p80 = scmp.eq.s32.totalorder %s14, 0
      %p81 = por %p79, %p80
      %p82 = scmp.ne.s32.totalorder %s74, %s76
      %p83 = scmp.eq.s32.totalorder %s19, 1
      %p84 = por %p82, %p83
      %p85 = scmp.ne.s32.totalorder %s76, %s77
      %p86 = scmp.eq.s32.totalorder %s19, 0
      %p87 = por %p85, %p86
      %p88 = scmp.ne.s32.totalorder %s76, %s77
      %p89 = scmp.eq.s32.totalorder %s20, 1
      %p90 = por %p88, %p89
      %p92 = scmp.ne.s32.totalorder %s77, %s91
      %p93 = scmp.eq.s32.totalorder %s20, 0
      %p94 = por %p92, %p93
      %s96 = sadd.s32 %s95, 1
      %p99 = scmp.eq.s32.totalorder %s14, 1
      %p100 = scmp.ne.s32.totalorder %s95, %s97
      %p101 = scmp.eq.s32.totalorder %s14, 0
      %p102 = por %p100, %p101
      %p103 = scmp.ne.s32.totalorder %s95, %s97
      %p104 = scmp.eq.s32.totalorder %s19, 1
      %p105 = por %p103, %p104
      %p106 = scmp.ne.s32.totalorder %s97, %s98
      %p107 = scmp.eq.s32.totalorder %s19, 0
      %p108 = por %p106, %p107
      %p109 = scmp.ne.s32.totalorder %s97, %s98
      %p110 = scmp.eq.s32.totalorder %s20, 1
      %p111 = por %p109, %p110
      %p113 = scmp.ne.s32.totalorder %s98, %s112
      %p114 = scmp.eq.s32.totalorder %s20, 0
      %p115 = por %p113, %p114
      %s116 = ssub.s32 %s14, %s21
      %p117 = scmp.eq.s32.totalorder %s116, 0
      %s119 = sadd.s32 %s118, 1
      %s120 = scalar_select %p117, %s118, %s119
      %p123 = pneg %p117
      %p124 = scmp.eq.s32.totalorder %s14, 1
      %p125 = por %p123, %p124
      %p126 = scmp.ne.s32.totalorder %s118, %s121
      %p127 = scmp.eq.s32.totalorder %s14, 0
      %p128 = por %p126, %p127
      %p129 = scmp.ne.s32.totalorder %s118, %s121
      %p130 = scmp.eq.s32.totalorder %s19, 1
      %p131 = por %p129, %p130
      %p132 = scmp.ne.s32.totalorder %s121, %s122
      %p133 = scmp.eq.s32.totalorder %s19, 0
      %p134 = por %p132, %p133
      %p135 = scmp.ne.s32.totalorder %s121, %s122
      %p136 = scmp.eq.s32.totalorder %s20, 1
      %p137 = por %p135, %p136
      %p139 = scmp.ne.s32.totalorder %s122, %s138
      %p140 = scmp.eq.s32.totalorder %s20, 0
      %p141 = por %p139, %p140
      %p142 = scmp.le.s32.totalorder 1, %s14
      %p143 = scmp.lt.s32.totalorder %s14, 3
      %p144 = pnand %p142, %p143
      %p145 = pneg %p144
      // Predicated region
      $region9: #{tpu_custom_call.1} parent=5 // pred_check
        _
      $region10: #{tpu_custom_call.1} parent=5 // pred_check_branch
        %147 = sbr.rel (%p144) target = $region12
      $region11: #{tpu_custom_call.1} parent=5 // pred_region
        %s148 = ssub.s32 %s14, 1
        // Predicated region
        $region13: #{tpu_custom_call.1} parent=11 // pred_check
          %p149 = pneg %p87
        $region14: #{tpu_custom_call.1} parent=11 // pred_check_branch
          %151 = sbr.rel (%p149) target = $region16
        $region15: #{tpu_custom_call.1} parent=11 // pred_region
          %s153 = ssub.s32 192, 192
          %154 = vsyncadd [#allocation4], %s153
          %s155 = sshll.u32 [#allocation3], 4
          %s156 = int_to_ptr.vmem [resolvable:$true] %s155
          %161 = dma.hbm_to_vmem [thread:$0]  %s2, 192, %s156, [#allocation4], 64, 64, 4
        $region16: #{tpu_custom_call.1} parent=11 // pred_fallthru
          _
        // Predicated region
        $region17: #{tpu_custom_call.1} parent=11 // pred_check
          %p162 = pneg %p108
        $region18: #{tpu_custom_call.1} parent=11 // pred_check_branch
          %164 = sbr.rel (%p162) target = $region20
        $region19: #{tpu_custom_call.1} parent=11 // pred_region
          _
        $region20: #{tpu_custom_call.1} parent=11 // pred_fallthru
          _
      $region12: #{tpu_custom_call.1} parent=5 // pred_fallthru
        _
      %p165 = scmp.lt.s32.totalorder %s14, 2
      // Predicated region
      $region21: #{tpu_custom_call.1} parent=5 // pred_check
        %p166 = pneg %p165
      $region22: #{tpu_custom_call.1} parent=5 // pred_check_branch
        %168 = sbr.rel (%p166) target = $region24
      $region23: #{tpu_custom_call.1} parent=5 // pred_region
        // Predicated region
        $region25: #{tpu_custom_call.1} parent=23 // pred_check
          %p169 = pneg %p34
        $region26: #{tpu_custom_call.1} parent=23 // pred_check_branch
          %171 = sbr.rel (%p169) target = $region28
        $region27: #{tpu_custom_call.1} parent=23 // pred_region
          %p172 = scmp.lt.s32.totalorder %s14, 1
          %s173 = scalar_select %p172, %s14, 1
          %s174 = smul.addr %s173, 2
          %s175 = smul.addr %s174, 4
          %s176 = scalar_lea.vmem %s0, %s175
        $region28: #{tpu_custom_call.1} parent=23 // pred_fallthru
          _
        // Predicated region
        $region29: #{tpu_custom_call.1} parent=23 // pred_check
          %p177 = pneg %p60
        $region30: #{tpu_custom_call.1} parent=23 // pred_check_branch
          %179 = sbr.rel (%p177) target = $region32
        $region31: #{tpu_custom_call.1} parent=23 // pred_region
          %p180 = scmp.lt.s32.totalorder %s14, 1
          %s181 = scalar_select %p180, %s14, 1
          %s182 = smul.addr %s181, 2
          %s183 = smul.addr %s182, 4
          %s184 = scalar_lea.vmem %s1, %s183
        $region32: #{tpu_custom_call.1} parent=23 // pred_fallthru
          _
      $region24: #{tpu_custom_call.1} parent=5 // pred_fallthru
        _
      %p185 = scmp.le.s32.totalorder 1, %s14
      %p186 = scmp.lt.s32.totalorder %s14, 3
      %p187 = pnand %p185, %p186
      %p188 = pneg %p187
      // Predicated region
      $region33: #{tpu_custom_call.1} parent=5 // pred_check
        _
      $region34: #{tpu_custom_call.1} parent=5 // pred_check_branch
        %190 = sbr.rel (%p187) target = $region36
      $region35: #{tpu_custom_call.1} parent=5 // pred_region
        %s191 = ssub.s32 %s14, 1
        // Predicated region
        $region37: #{tpu_custom_call.1} parent=35 // pred_check
          %p192 = pneg %p87
        $region38: #{tpu_custom_call.1} parent=35 // pred_check_branch
          %194 = sbr.rel (%p192) target = $region40
        $region39: #{tpu_custom_call.1} parent=35 // pred_region
          %195 = dma.done [#allocation4], 192
        $region40: #{tpu_custom_call.1} parent=35 // pred_fallthru
          _
        %p196 = scmp.lt.s32.totalorder %s19, 1
        %s197 = scalar_select %p196, %s19, 1
        %s198 = smul.addr %s197, 2
        %s199 = smul.addr %s198, 4
        %s200 = scalar_lea.vmem %s0, %s199
        %p201 = pneg %p40
        %p202 = pneg %p37
        %p203 = scmp.lt.s32.totalorder %s19, 1
        %s204 = scalar_select %p203, %s19, 1
        %s205 = smul.addr %s204, 2
        %s206 = smul.addr %s205, 4
        %s207 = scalar_lea.vmem %s1, %s206
        %p208 = pneg %p66
        %p209 = pneg %p63
        %p210 = pneg %p87
        %p211 = pneg %p84
        %p212 = pneg %p108
        %p213 = pneg %p105
        %p214 = pneg %p134
        %p215 = pneg %p131
        %s216 = sand.u32 %s121, 1
        %s217 = scalar_lea.sflag [#allocation5], %s216
        %s218 = sand.u32 %s121, 1
        %s219 = smul.addr %s218, 8
        %s220 = scalar_lea.vmem [#allocation6], %s219
        %p221 = scmp.lt.s32.totalorder %s19, 1
        %s222 = scalar_select %p221, %s19, 1
        %s223 = smul.addr %s222, 2
        %s224 = smul.addr %s223, 4
        %s225 = scalar_lea.vmem %s0, %s224
        %p226 = scmp.lt.s32.totalorder %s19, 1
        %s227 = scalar_select %p226, %s19, 1
        %s228 = smul.addr %s227, 2
        %s229 = smul.addr %s228, 4
        %s230 = scalar_lea.vmem %s1, %s229
        %v232 = vld [vmem:[%s230] sm:$0xf]
        %v233 = vld [vmem:[%s230 + $0x4] sm:$0xf]
        %v234 = vld [vmem:[%s225] sm:$0xf]
        %v235 = vld [vmem:[%s225 + $0x4] sm:$0xf]
        %vm236 = vcmask 60416
        %237 = vst.msk [vmem:[#allocation2] sm:$0xf] %vm236, %v234
        %238 = vst.msk [vmem:[#allocation2 + $0x4] sm:$0xf] %vm236, %v235
        %v239 = vunpack.c.l.bf16 %v234
        %v240 = vunpack.c.l.bf16 %v235
        %v243 = vunpack.c.l.b16 %v232
        %v244 = vunpack.c.l.b16 %v233
        %v245 = vpack.c.b16 %v244, %v243
        %v248 = vunpack.c.l.b16 %v234
        %v249 = vunpack.c.l.b16 %v235
        %v250 = vpack.c.b16 %v249, %v248
        %vm252 = vcmask 130048
        %v254 = vsel %vm252, %v245, 0
        %256 = vmatprep.subr.bf16.mxu0 0
        %257 = vmatpush1.bf16.msra.mxu0 0
        %258 = vmatprep.subr.bf16.mxu0 0
        %259 = vmatpush1.bf16.msra.mxu0 0
        %260 = vmatprep.subr.bf16.mxu0 0
        %261 = vmatpush1.bf16.msra.mxu0 0
        %262 = vmatprep.subr.bf16.mxu0 0
        %263 = vmatpush1.bf16.msra.mxu0 0
        %264 = vmatprep.subr.bf16.mxu0 0
        %265 = vmatpush1.bf16.msra.mxu0 0
        %266 = vmatprep.subr.bf16.mxu0 0
        %267 = vmatpush1.bf16.msra.mxu0 0
        %268 = vmatprep.subr.bf16.mxu0 0
        %269 = vmatpush1.bf16.msra.mxu0 0
        %270 = vmatprep.subr.bf16.mxu0 0
        %271 = vmatpush1.bf16.msra.mxu0 %v250
        %272 = vmatprep.subr.bf16.mxu0 0
        %273 = vmatpush2.bf16.msra.mxu0 0
        %274 = vmatprep.subr.bf16.mxu0 0
        %275 = vmatpush2.bf16.msra.mxu0 0
        %276 = vmatprep.subr.bf16.mxu0 0
        %277 = vmatpush2.bf16.msra.mxu0 0
        %278 = vmatprep.subr.bf16.mxu0 0
        %279 = vmatpush2.bf16.msra.mxu0 0
        %280 = vmatprep.subr.bf16.mxu0 0
        %281 = vmatpush2.bf16.msra.mxu0 0
        %282 = vmatprep.subr.bf16.mxu0 0
        %283 = vmatpush2.bf16.msra.mxu0 0
        %284 = vmatprep.subr.bf16.mxu0 0
        %285 = vmatpush2.bf16.msra.mxu0 0
        %286 = vmatprep.subr.bf16.mxu0 0
        %287 = vmatpush2.bf16.msra.mxu0 0
        %288 = vmatprep.mubr.bf16.mxu0 0
        %289 = vmatmul.mubr.bf16.gmra.mxu0 %v254
        %v290 = vpop.f32.mrf.mxu0
        %v291 = vadd.f32 0.0, %v290
        %v292 = vpop.f32.mrf.mxu0
        %v293 = vpop.f32.mrf.mxu0
        %v294 = vadd.f32 0.0, %v293
        %v295 = vpop.f32.mrf.mxu0
        %296 = vdwg.mxu0
        %v297 = vpack.c.bf16 %v294, %v291
        %v299 = vunpack.c.l.b16 %v297
        %v300 = vunpack.c.h.b16 %v297
        %v301 = vpack.c.b16 %v299, %v299
        %v302 = vpack.c.b16 %v300, %v300
        %303 = vrot.lane.b32.xlu0 %v301, 8
        %v304 = vpop.permute.xlu0 %303
        %305 = vrot.lane.b32.xlu0 %v302, 8
        %v306 = vpop.permute.xlu0 %305
        %vm309 = vcmask 126016
        %310 = vst.msk [vmem:[#allocation2] sm:$0xf] %vm309, %v304
        %311 = vst.msk [vmem:[#allocation2 + $0x4] sm:$0xf] %vm309, %v306
        %312 = vmatprep.subr.bf16.mxu0 0
        %313 = vmatpush1.bf16.msra.mxu0 0
        %314 = vmatprep.subr.bf16.mxu0 0
        %315 = vmatpush1.bf16.msra.mxu0 0
        %316 = vmatprep.subr.bf16.mxu0 0
        %317 = vmatpush1.bf16.msra.mxu0 0
        %318 = vmatprep.subr.bf16.mxu0 0
        %319 = vmatpush1.bf16.msra.mxu0 0
        %320 = vmatprep.subr.bf16.mxu0 0
        %321 = vmatpush1.bf16.msra.mxu0 0
        %322 = vmatprep.subr.bf16.mxu0 0
        %323 = vmatpush1.bf16.msra.mxu0 0
        %324 = vmatprep.subr.bf16.mxu0 0
        %325 = vmatpush1.bf16.msra.mxu0 0
        %326 = vmatprep.subr.bf16.mxu0 0
        %327 = vmatpush1.bf16.msra.mxu0 %v297
        %328 = vmatprep.subr.bf16.mxu0 0
        %329 = vmatpush2.bf16.msra.mxu0 0
        %330 = vmatprep.subr.bf16.mxu0 0
        %331 = vmatpush2.bf16.msra.mxu0 0
        %332 = vmatprep.subr.bf16.mxu0 0
        %333 = vmatpush2.bf16.msra.mxu0 0
        %334 = vmatprep.subr.bf16.mxu0 0
        %335 = vmatpush2.bf16.msra.mxu0 0
        %336 = vmatprep.subr.bf16.mxu0 0
        %337 = vmatpush2.bf16.msra.mxu0 0
        %338 = vmatprep.subr.bf16.mxu0 0
        %339 = vmatpush2.bf16.msra.mxu0 0
        %340 = vmatprep.subr.bf16.mxu0 0
        %341 = vmatpush2.bf16.msra.mxu0 0
        %342 = vmatprep.subr.bf16.mxu0 0
        %343 = vmatpush2.bf16.msra.mxu0 0
        %344 = vmatprep.mubr.bf16.mxu0 0
        %345 = vmatmul.mubr.bf16.gmra.mxu0 %v254
        %v346 = vpop.f32.mrf.mxu0
        %v347 = vadd.f32 0.0, %v346
        %v348 = vpop.f32.mrf.mxu0
        %v349 = vpop.f32.mrf.mxu0
        %v350 = vadd.f32 0.0, %v349
        %v351 = vpop.f32.mrf.mxu0
        %352 = vdwg.mxu0
        %v353 = vmul.f32 %v347, 2.0
        %v354 = vmul.f32 %v350, 2.0
        %v355 = vsub.f32 %v353, %v239
        %v356 = vsub.f32 %v354, %v240
        %v357 = vpack.c.bf16 %v356, %v355
        %v359 = vunpack.c.l.b16 %v357
        %v360 = vunpack.c.h.b16 %v357
        %v361 = vpack.c.b16 %v359, %v359
        %v362 = vpack.c.b16 %v360, %v360
        %363 = vrot.lane.b32.xlu0 %v361, 16
        %v364 = vpop.permute.xlu0 %363
        %365 = vrot.lane.b32.xlu0 %v362, 16
        %v366 = vpop.permute.xlu0 %365
        %vm369 = vcmask 191616
        %370 = vst.msk [vmem:[#allocation2] sm:$0xf] %vm369, %v364
        %371 = vst.msk [vmem:[#allocation2 + $0x4] sm:$0xf] %vm369, %v366
        %v372 = vld [vmem:[#allocation2] sm:$0xf]
        %v373 = vld [vmem:[#allocation2 + $0x4] sm:$0xf]
        %v374 = vld [vmem:[#allocation3] sm:$0xf]
        %v375 = vld [vmem:[#allocation3 + $0x4] sm:$0xf]
        %v376 = vld [vmem:[#allocation3 + $0x8] sm:$0xf]
        %v377 = vld [vmem:[%s3] sm:$0x1]
        %v379 = vlaneseq
        %v380 = vshrl.u32 %v379, 7
        %v381 = vsub.s32 0, %v380
        %v382 = vrot.slane %v377, %v381
        %v386 = vunpack.c.l.b16 %v372
        %v387 = vunpack.c.l.b16 %v373
        %v388 = vpack.c.b16 %v387, %v386
        %v392 = vunpack.c.l.b16 %v374
        %v393 = vunpack.c.l.b16 %v375
        %v394 = vunpack.c.l.b16 %v376
        %v395 = vpack.c.b16 %v393, %v392
        %v396 = vpack.c.b16 %v394, %v394
        %vm398 = vcmask 195584
        %v400 = vsel %vm398, %v388, 0
        %vm402 = vcmask 1043456
        %v404 = vsel %vm402, %v396, 0
        %406 = vmatprep.subr.bf16.mxu0 0
        %407 = vmatpush1.bf16.msra.mxu0 0
        %408 = vmatprep.subr.bf16.mxu0 0
        %409 = vmatpush1.bf16.msra.mxu0 0
        %410 = vmatprep.subr.bf16.mxu0 0
        %411 = vmatpush1.bf16.msra.mxu0 0
        %412 = vmatprep.subr.bf16.mxu0 0
        %413 = vmatpush1.bf16.msra.mxu0 0
        %414 = vmatprep.subr.bf16.mxu0 0
        %415 = vmatpush1.bf16.msra.mxu0 0
        %416 = vmatprep.subr.bf16.mxu0 0
        %417 = vmatpush1.bf16.msra.mxu0 0
        %418 = vmatprep.subr.bf16.mxu0 0
        %419 = vmatpush1.bf16.msra.mxu0 %v404
        %420 = vmatprep.subr.bf16.mxu0 0
        %421 = vmatpush1.bf16.msra.mxu0 %v395
        %422 = vmatprep.subr.bf16.mxu0 0
        %423 = vmatpush2.bf16.msra.mxu0 0
        %424 = vmatprep.subr.bf16.mxu0 0
        %425 = vmatpush2.bf16.msra.mxu0 0
        %426 = vmatprep.subr.bf16.mxu0 0
        %427 = vmatpush2.bf16.msra.mxu0 0
        %428 = vmatprep.subr.bf16.mxu0 0
        %429 = vmatpush2.bf16.msra.mxu0 0
        %430 = vmatprep.subr.bf16.mxu0 0
        %431 = vmatpush2.bf16.msra.mxu0 0
        %432 = vmatprep.subr.bf16.mxu0 0
        %433 = vmatpush2.bf16.msra.mxu0 0
        %434 = vmatprep.subr.bf16.mxu0 0
        %435 = vmatpush2.bf16.msra.mxu0 0
        %436 = vmatprep.subr.bf16.mxu0 0
        %437 = vmatpush2.bf16.msra.mxu0 0
        %438 = vmatprep.mubr.bf16.mxu0 0
        %439 = vmatmul.mubr.bf16.gmra.mxu0 %v400
        %v440 = vpop.f32.mrf.mxu0
        %v441 = vadd.f32 %v382, %v440
        %v442 = vpop.f32.mrf.mxu0
        %v443 = vpop.f32.mrf.mxu0
        %v444 = vadd.f32 %v382, %v443
        %v445 = vpop.f32.mrf.mxu0
        %446 = vdwg.mxu0
        %v447 = vpack.c.bf16 %v444, %v441
        %v449 = vunpack.c.l.b16 %v447
        %v450 = vunpack.c.h.b16 %v447
        %v451 = vpack.c.b16 %v449, %v449
        %v452 = vpack.c.b16 %v450, %v450
        %455 = vst [vmem:[%s220] sm:$0xf] %v451
        %456 = vst [vmem:[%s220 + $0x4] sm:$0xf] %v452
        %s457 = sand.u32 %s121, 1
        %s458 = scalar_lea.sflag [#allocation5], %s457
        %s459 = sand.u32 %s121, 1
        %s460 = smul.addr %s459, 8
        %s461 = scalar_lea.vmem [#allocation6], %s460
        // Predicated region
        $region41: #{tpu_custom_call.1} parent=35 // pred_check
          %p462 = pneg %p131
        $region42: #{tpu_custom_call.1} parent=35 // pred_check_branch
          %464 = sbr.rel (%p462) target = $region44
        $region43: #{tpu_custom_call.1} parent=35 // pred_region
          %s466 = ssub.s32 128, 128
          %467 = vsyncadd %s458, %s466
          %s468 = smul.addr %s19, 2
          %s469 = smul.addr %s468, 64
          %s470 = scalar_lea.hbm %s4, %s469
          %s471 = sshll.u32 %s461, 4
          %s472 = int_to_ptr.vmem [resolvable:$true] %s471
          %477 = dma.vmem_to_hbm [thread:$0]  %s472, 128, %s470, %s458, 64, 64, 4
        $region44: #{tpu_custom_call.1} parent=35 // pred_fallthru
          _
      $region36: #{tpu_custom_call.1} parent=5 // pred_fallthru
        _
      %p478 = scmp.le.s32.totalorder 2, %s14
      // Predicated region
      $region45: #{tpu_custom_call.1} parent=5 // pred_check
        %p479 = pneg %p478
      $region46: #{tpu_custom_call.1} parent=5 // pred_check_branch
        %481 = sbr.rel (%p479) target = $region48
      $region47: #{tpu_custom_call.1} parent=5 // pred_region
        %s482 = ssub.s32 %s14, 2
        // Predicated region
        $region49: #{tpu_custom_call.1} parent=47 // pred_check
          %p483 = pneg %p137
        $region50: #{tpu_custom_call.1} parent=47 // pred_check_branch
          %485 = sbr.rel (%p483) target = $region52
        $region51: #{tpu_custom_call.1} parent=47 // pred_region
          %s486 = sand.u32 %s122, 1
          %s487 = scalar_lea.sflag [#allocation5], %s486
          %s488 = sand.u32 %s122, 1
          %s489 = smul.addr %s488, 8
          %s490 = scalar_lea.vmem [#allocation6], %s489
          %491 = dma.done %s487, 128
        $region52: #{tpu_custom_call.1} parent=47 // pred_fallthru
          _
      $region48: #{tpu_custom_call.1} parent=5 // pred_fallthru
        _
    $region6: #{tpu_custom_call.1} parent=1 // loop_footer
      %s18 = sadd.s32 1, %s14
    $region7: #{tpu_custom_call.1} parent=1 // loop_footer_branch
      %13 = sbr.rel target = $region3
    $region8: #{tpu_custom_call.1} parent=1 // loop_exit
      _
    %492 = vsyncpa [#allocation4], 1
    %s493 = scalar_lea.sflag [#allocation4], 1
    %494 = vsyncpa %s493, 1
    %495 = vsyncpa [#allocation5], 1
    %s496 = scalar_lea.sflag [#allocation5], 1
    %497 = vsyncpa %s496, 1

</llo_original>
